<compile_context>
chip_gen: v5e
topology: v5e:2x2
jax: 0.10.0
libtpu: 0.0.40
codegen_flags: <defaults>
</compile_context>

<pallas_src>
import functools

import jax
import jax.numpy as jnp
from jax import lax
from jax.experimental import pallas as pl
from jax.experimental.pallas import tpu as pltpu


def _layernorm_kernel(x_ref, g_ref, b_ref, o_ref, *, eps, dim, dim_p):
    # x_ref: (block_rows, dim_p) tile; g_ref/b_ref: (1, dim_p)
    x = x_ref[...].astype(jnp.float32)
    if dim_p != dim:
        # Mask padded lanes so the row statistics only see the true `dim`
        # columns (robust even if the padded HBM lanes were not zero).
        lane = lax.broadcasted_iota(jnp.int32, x.shape, 1)
        x = jnp.where(lane < dim, x, 0.0)
    g = g_ref[...].astype(jnp.float32)
    b = b_ref[...].astype(jnp.float32)

    inv_d = jnp.float32(1.0 / dim)
    # Two independent per-row lane reductions (overlap on the XLU).
    s1 = jnp.sum(x, axis=-1, keepdims=True)
    s2 = jnp.sum(x * x, axis=-1, keepdims=True)
    mean = s1 * inv_d
    # E[x^2] - mean^2 in f32, clamped to avoid negative due to cancellation.
    var = jnp.maximum(s2 * inv_d - mean * mean, 0.0)
    inv = lax.rsqrt(var + jnp.float32(eps))          # (br, 1)
    c = mean * inv                                   # (br, 1)

    # y = (x*inv - c) * g + b : 4 elementwise ops/elem, no (br,dim) f32 temps
    # beyond the result itself (padded lanes: (0 - c)*0 + 0 = 0, sliced away).
    o_ref[...] = ((x * inv - c) * g + b).astype(o_ref.dtype)


def _vmem_capacity_bytes():
    try:
        return int(pltpu.get_tpu_info().vmem_capacity_bytes)
    except Exception:
        return 64 * 1024 * 1024   # conservative default (v7x per-TC VMEM)


def _choose_block_rows(rows, dim_p, io_itemsize, *, max_block_rows=1024,
                       step_footprint_budget=8 * 1024 * 1024,
                       min_grid_steps=4):
    """Largest row tile whose real per-step VMEM footprint fits the budget.

    Footprint per row = double-buffered input + double-buffered output windows
    plus ~3 f32 in-kernel temporaries of the tile (x upcast / x*x / result).
    """
    per_row_bytes = (2 * dim_p * io_itemsize        # input, double-buffered
                     + 2 * dim_p * io_itemsize      # output, double-buffered
                     + 3 * dim_p * 4)               # f32 temporaries
    br = step_footprint_budget // max(per_row_bytes, 1)
    br = int(min(br, max_block_rows, rows))
    # Keep >= min_grid_steps grid steps when the problem allows (v7x has 2
    # TCs/chip; >=2 steps per core restores double-buffering overlap).
    if rows >= 8 * min_grid_steps:
        br = min(br, -(-rows // min_grid_steps))
    br = max(8, (br // 8) * 8)                      # multiple of 8 sublanes
    return min(br, rows)


def layernorm_pallas(x2d, gamma, beta, *, eps=1e-5, max_block_rows=1024):
    """LayerNorm over the last axis of a 2-D array (rows, dim)."""
    rows, dim = x2d.shape
    dim_p = ((dim + 127) // 128) * 128              # lane-dense last dim

    if dim_p != dim:
        # Pad with zeros: padded lanes contribute 0 to the (masked) sums and
        # produce 0 in the output (gamma/beta padded with 0); sliced off below.
        x_in = jnp.pad(x2d, ((0, 0), (0, dim_p - dim)))
        g_in = jnp.pad(gamma, (0, dim_p - dim)).reshape(1, dim_p)
        b_in = jnp.pad(beta, (0, dim_p - dim)).reshape(1, dim_p)
    else:
        x_in = x2d
        g_in = gamma.reshape(1, dim_p)
        b_in = beta.reshape(1, dim_p)

    itemsize = jnp.dtype(x2d.dtype).itemsize
    br = _choose_block_rows(rows, dim_p, itemsize,
                            max_block_rows=max_block_rows)
    grid = (-(-rows // br),)

    vmem_limit = min(32 * 1024 * 1024, _vmem_capacity_bytes() // 2)

    cost = pl.CostEstimate(
        flops=7 * rows * dim_p,
        transcendentals=rows,
        bytes_accessed=2 * rows * dim_p * itemsize
        + 2 * dim_p * jnp.dtype(gamma.dtype).itemsize,
    )

    out = pl.pallas_call(
        functools.partial(_layernorm_kernel, eps=eps, dim=dim, dim_p=dim_p),
        out_shape=jax.ShapeDtypeStruct((rows, dim_p), x2d.dtype),
        grid_spec=pltpu.PrefetchScalarGridSpec(
            num_scalar_prefetch=0,
            grid=grid,
            in_specs=[
                # NOTE: if DMA gets exposed at small tiles, switch this spec
                # to pipeline_mode=pl.Buffered(3) rather than growing the tile.
                pl.BlockSpec((br, dim_p), lambda i: (i, 0)),
                pl.BlockSpec((1, dim_p), lambda i: (0, 0)),
                pl.BlockSpec((1, dim_p), lambda i: (0, 0)),
            ],
            out_specs=pl.BlockSpec((br, dim_p), lambda i: (i, 0)),
        ),
        compiler_params=pltpu.CompilerParams(
            dimension_semantics=("parallel",),
            vmem_limit_bytes=vmem_limit,
        ),
        cost_estimate=cost,
    )(x_in, g_in, b_in)

    if dim_p != dim:
        out = out[:, :dim]
    return out


class PreNorm:
    """JAX/Pallas equivalent of the PyTorch PreNorm module."""

    def __init__(self, dim, fn, dtype=jnp.float32):
        # nn.LayerNorm(dim): weight=ones(dim), bias=zeros(dim), eps=1e-5
        self.dim = dim
        self.gamma = jnp.ones((dim,), dtype=dtype)
        self.beta = jnp.zeros((dim,), dtype=dtype)
        self.eps = 1e-5
        self.fn = fn

    def __call__(self, x, **kwargs):
        # x: (batch, seq, dim)
        b, s, d = x.shape
        assert d == self.dim
        x2d = x.reshape(b * s, d)
        y2d = layernorm_pallas(x2d, self.gamma, self.beta, eps=self.eps)
        y = y2d.reshape(b, s, d)
        # TODO(synk): when fn's first layer is a known Linear (QKV / FFN
        # in-proj), fuse that matmul into the LayerNorm pallas_call with a
        # K-grid accumulator to kill the HBM round-trip of the normalized
        # activations; fn is an arbitrary callable in this module, so it stays
        # un-fused here.
        return self.fn(y, **kwargs)


def _ln_ref(x, gamma, beta, eps):
    xf = x.astype(jnp.float32)
    mean = jnp.mean(xf, axis=-1, keepdims=True)
    var = jnp.mean((xf - mean) ** 2, axis=-1, keepdims=True)
    return ((xf - mean) * lax.rsqrt(var + eps) * gamma.astype(jnp.float32)
            + beta.astype(jnp.float32))


if __name__ == "__main__":
    key = jax.random.PRNGKey(0)

    # --- small demo shape (matches module layout: (batch, seq, dim)) -------
    batch, seq, dim = 2, 8, 32
    kx, kw, kb, kx2 = jax.random.split(key, 4)
    x = jax.random.normal(kx, (batch, seq, dim), dtype=jnp.float32)

    # Example `fn`: a deterministic linear layer (plain JAX glue; fn is not
    # part of PreNorm's own parameters).
    w = jax.random.normal(kw, (dim, dim), dtype=jnp.float32) * 0.02
    bvec = jax.random.normal(kb, (dim,), dtype=jnp.float32) * 0.02

    def fn(y):
        return y @ w + bvec

    prenorm = PreNorm(dim, fn)
    prenorm.gamma = jnp.linspace(0.5, 1.5, dim, dtype=jnp.float32)
    prenorm.beta = jnp.linspace(-0.1, 0.1, dim, dtype=jnp.float32)

    out = jax.block_until_ready(prenorm(x))
    ref = _ln_ref(x, prenorm.gamma, prenorm.beta, prenorm.eps) @ w + bvec
    assert out.shape == (batch, seq, dim)
    assert jnp.allclose(out, ref, atol=1e-5, rtol=1e-5), "small-shape mismatch"

    # --- moderate shape: multi-block grid, lane-dense dim (multiple of 128) -
    b2, s2, d2 = 2, 256, 256
    x2 = jax.random.normal(kx2, (b2, s2, d2), dtype=jnp.float32)
    g2 = jnp.linspace(0.8, 1.2, d2, dtype=jnp.float32)
    be2 = jnp.linspace(-0.05, 0.05, d2, dtype=jnp.float32)
    y2 = jax.block_until_ready(
        layernorm_pallas(x2.reshape(b2 * s2, d2), g2, be2).reshape(b2, s2, d2))
    ref2 = _ln_ref(x2, g2, be2, 1e-5)
    assert jnp.allclose(y2, ref2, atol=1e-4, rtol=1e-4), "moderate-shape mismatch"

    # --- non-multiple-of-128 dim (ViT-Tiny style): exercises the padded path -
    d3 = 192
    x4 = jax.random.normal(kx2, (b2, s2, d3), dtype=jnp.float32)
    g4 = jnp.linspace(0.9, 1.1, d3, dtype=jnp.float32)
    be4 = jnp.linspace(-0.02, 0.02, d3, dtype=jnp.float32)
    y4 = jax.block_until_ready(
        layernorm_pallas(x4.reshape(b2 * s2, d3), g4, be4).reshape(b2, s2, d3))
    ref4 = _ln_ref(x4, g4, be4, 1e-5)
    assert jnp.allclose(y4, ref4, atol=1e-4, rtol=1e-4), "padded-dim mismatch"

    # --- bf16 pass-through (kernel upcasts internally, IO stays bf16) -------
    x3 = x2.astype(jnp.bfloat16)
    y3 = jax.block_until_ready(
        layernorm_pallas(x3.reshape(b2 * s2, d2), g2, be2).reshape(b2, s2, d2))
    ref3 = _ln_ref(x3, g2, be2, 1e-5).astype(jnp.bfloat16)
    assert jnp.allclose(y3.astype(jnp.float32), ref3.astype(jnp.float32),
                        atol=3e-2, rtol=3e-2), "bf16 mismatch"

    print("KERNEL_OK")
</pallas_src>

<mosaic_0001>
module attributes {stable_mosaic.version = 11 : i64} {
  func.func @_layernorm_kernel(%arg0: i32, %arg1: memref<16x128xf32, #tpu.memory_space<vmem>>, %arg2: memref<1x128xf32, #tpu.memory_space<vmem>>, %arg3: memref<1x128xf32, #tpu.memory_space<vmem>>, %arg4: memref<16x128xf32, #tpu.memory_space<vmem>>) attributes {dimension_semantics = [#tpu.dimension_semantics<parallel>], iteration_bounds = array<i64: 1>, scalar_prefetch = 0 : i64, scratch_operands = 0 : i64, tpu.core_type = #tpu.core_type<tc>, window_params = [{transform_indices = @transform_0, window_bounds = array<i64: 16, 128>}, {pipeline_mode = #tpu.pipeline_mode<synchronous>, transform_indices = @transform_1, window_bounds = array<i64: 1, 128>}, {pipeline_mode = #tpu.pipeline_mode<synchronous>, transform_indices = @transform_2, window_bounds = array<i64: 1, 128>}, {transform_indices = @transform_3, window_bounds = array<i64: 16, 128>}]} {
    %c0 = arith.constant 0 : index
    %c0_0 = arith.constant 0 : index
    %0 = vector.load %arg1[%c0, %c0_0] : memref<16x128xf32, #tpu.memory_space<vmem>>, vector<16x128xf32>
    %1 = tpu.iota {dimensions = array<i32: 1>} : vector<16x128xi32>
    %c32_i32 = arith.constant 32 : i32
    %2 = vector.broadcast %c32_i32 : i32 to vector<16x128xi32>
    %3 = arith.cmpi slt, %1, %2 : vector<16x128xi32>
    %cst = arith.constant 0.000000e+00 : f32
    %4 = vector.broadcast %cst : f32 to vector<16x128xf32>
    %5 = arith.select %3, %0, %4 : vector<16x128xi1>, vector<16x128xf32>
    %c0_1 = arith.constant 0 : index
    %c0_2 = arith.constant 0 : index
    %6 = vector.load %arg2[%c0_1, %c0_2] : memref<1x128xf32, #tpu.memory_space<vmem>>, vector<1x128xf32>
    %c0_3 = arith.constant 0 : index
    %c0_4 = arith.constant 0 : index
    %7 = vector.load %arg3[%c0_3, %c0_4] : memref<1x128xf32, #tpu.memory_space<vmem>>, vector<1x128xf32>
    %cst_5 = arith.constant dense<0.000000e+00> : vector<16xf32>
    %8 = vector.multi_reduction <add>, %5, %cst_5 [1] : vector<16x128xf32> to vector<16xf32>
    %9 = vector.shape_cast %8 : vector<16xf32> to vector<16x1xf32>
    %10 = arith.mulf %5, %5 : vector<16x128xf32>
    %cst_6 = arith.constant dense<0.000000e+00> : vector<16xf32>
    %11 = vector.multi_reduction <add>, %10, %cst_6 [1] : vector<16x128xf32> to vector<16xf32>
    %12 = vector.shape_cast %11 : vector<16xf32> to vector<16x1xf32>
    %cst_7 = arith.constant 3.125000e-02 : f32
    %13 = vector.broadcast %cst_7 : f32 to vector<16x1xf32>
    %14 = arith.mulf %9, %13 : vector<16x1xf32>
    %cst_8 = arith.constant 3.125000e-02 : f32
    %15 = vector.broadcast %cst_8 : f32 to vector<16x1xf32>
    %16 = arith.mulf %12, %15 : vector<16x1xf32>
    %17 = arith.mulf %14, %14 : vector<16x1xf32>
    %18 = arith.subf %16, %17 : vector<16x1xf32>
    %cst_9 = arith.constant 0.000000e+00 : f32
    %19 = vector.broadcast %cst_9 : f32 to vector<16x1xf32>
    %20 = arith.maximumf %18, %19 : vector<16x1xf32>
    %cst_10 = arith.constant 9.99999974E-6 : f32
    %21 = vector.broadcast %cst_10 : f32 to vector<16x1xf32>
    %22 = arith.addf %20, %21 : vector<16x1xf32>
    %23 = math.rsqrt %22 : vector<16x1xf32>
    %24 = arith.mulf %14, %23 : vector<16x1xf32>
    %25 = vector.broadcast %23 : vector<16x1xf32> to vector<16x128xf32>
    %26 = arith.mulf %5, %25 : vector<16x128xf32>
    %27 = vector.broadcast %24 : vector<16x1xf32> to vector<16x128xf32>
    %28 = arith.subf %26, %27 : vector<16x128xf32>
    %29 = vector.broadcast %6 : vector<1x128xf32> to vector<16x128xf32>
    %30 = arith.mulf %28, %29 : vector<16x128xf32>
    %31 = vector.broadcast %7 : vector<1x128xf32> to vector<16x128xf32>
    %32 = arith.addf %30, %31 : vector<16x128xf32>
    %c0_11 = arith.constant 0 : index
    %c0_12 = arith.constant 0 : index
    %33 = vector.load %arg4[%c0_11, %c0_12] : memref<16x128xf32, #tpu.memory_space<vmem>>, vector<16x128xf32>
    tpu.vector_store %arg4[%c0_11, %c0_12], %32 {strides = array<i32>} : memref<16x128xf32, #tpu.memory_space<vmem>>, vector<16x128xf32>,
    return
  }
  func.func @transform_0(%arg0: i32) -> (i32, i32) {
    %c0_i32 = arith.constant 0 : i32
    %c0_i32_0 = arith.constant 0 : i32
    return %arg0, %c0_i32 : i32, i32
  }
  func.func @transform_1(%arg0: i32) -> (i32, i32) {
    %c0_i32 = arith.constant 0 : i32
    %c0_i32_0 = arith.constant 0 : i32
    %c0_i32_1 = arith.constant 0 : i32
    return %c0_i32, %c0_i32_0 : i32, i32
  }
  func.func @transform_2(%arg0: i32) -> (i32, i32) {
    %c0_i32 = arith.constant 0 : i32
    %c0_i32_0 = arith.constant 0 : i32
    %c0_i32_1 = arith.constant 0 : i32
    return %c0_i32, %c0_i32_0 : i32, i32
  }
  func.func @transform_3(%arg0: i32) -> (i32, i32) {
    %c0_i32 = arith.constant 0 : i32
    %c0_i32_0 = arith.constant 0 : i32
    return %arg0, %c0_i32 : i32, i32
  }
}

</mosaic_0001>

<llo_original>
// kernel: tpu_custom_call.1
$region0: #{tpu_custom_call.1}
  #allocation0 [shape = 'u32[]', space=smem, size = 0x4, offset = 0x4, fixed_abs, tag = 'smem constant byte address 0x4 - core index']
  #allocation1 [shape = 'u32[72,128]{1,0:T(1,128)}', space=vmem, size = 0x9000, scoped, tag = 'internal scratch']
  %s0 = inlined_call_operand.hbm [shape: f32[16,128], index: 0, kind: input, shape index: {}]
  %s1 = inlined_call_operand.hbm [shape: f32[1,128], index: 1, kind: input, shape index: {}]
  %s2 = inlined_call_operand.vmem [shape: f32[1,128], index: 2, kind: input, shape index: {}]
  %s3 = inlined_call_operand.hbm [shape: f32[16,128], index: 3, kind: output, shape index: {}]
  %s4 = sld [smem:[#allocation0]]
  $region30: #{tpu_custom_call.1} parent=0
    _
  %s6 = ssub.s32 1, %s4
  %s7 = scalar_select 0, %s6, %s4
  $region1: #{tpu_custom_call.1} parent=0
    #allocation2 [shape = 'u8[8192]{0}', space=vmem, size = 0x2000, scoped, tag = 'input window, operand 0, single buffered']
    #allocation3 [shape = 's32[1]{0}', space=sflag, size = 0x4, scoped, tag = 'scoped memory for tpu_custom_call.1']
    #allocation4 [shape = 's32[1]{0}', space=sflag, size = 0x4, scoped, tag = 'scoped memory for tpu_custom_call.1']
    #allocation5 [shape = 'u8[512]{0}', space=vmem, size = 0x400, scoped, tag = 'input window, operand 1, single buffered']
    #allocation6 [shape = 's32[1]{0}', space=sflag, size = 0x4, scoped, tag = 'scoped memory for tpu_custom_call.1']
    #allocation7 [shape = 'u8[8192]{0}', space=vmem, size = 0x2000, scoped, tag = 'output window, operand 0, single buffered']
    %8 = vsyncpa [#allocation3], 0
    %9 = vsyncpa [#allocation6], 0
    %10 = vsyncpa [#allocation4], 0
    // Predicated region
    $region2: #{tpu_custom_call.1} parent=1 // pred_check
      _
    $region3: #{tpu_custom_call.1} parent=1 // pred_check_branch
      %12 = sbr.rel (0) target = $region5
    $region4: #{tpu_custom_call.1} parent=1 // pred_region
      %14 = vsyncadd [#allocation3], 0
      %s15 = sshll.u32 %s0, 4
      %s16 = int_to_ptr.hbm [resolvable:$true] %s15
      %s17 = sshll.u32 [#allocation2], 4
      %s18 = int_to_ptr.vmem [resolvable:$true] %s17
      %23 = dma.hbm_to_vmem [thread:$0]  %s16, 256, %s18, [#allocation3], 128, 128, 8
    $region5: #{tpu_custom_call.1} parent=1 // pred_fallthru
      _
    // Predicated region
    $region6: #{tpu_custom_call.1} parent=1 // pred_check
      _
    $region7: #{tpu_custom_call.1} parent=1 // pred_check_branch
      %25 = sbr.rel (0) target = $region9
    $region8: #{tpu_custom_call.1} parent=1 // pred_region
      %27 = vsyncadd [#allocation6], 0
      %s29 = sshll.u32 %s1, 4
      %s30 = int_to_ptr.hbm [resolvable:$true] %s29
      %s31 = sshll.u32 [#allocation5], 4
      %s32 = int_to_ptr.vmem [resolvable:$true] %s31
      %34 = dma.hbm_to_vmem [thread:$0]  %s30, 16, %s32, [#allocation6]
    $region9: #{tpu_custom_call.1} parent=1 // pred_fallthru
      _
    // Predicated region
    $region10: #{tpu_custom_call.1} parent=1 // pred_check
      _
    $region11: #{tpu_custom_call.1} parent=1 // pred_check_branch
      %36 = sbr.rel (0) target = $region13
    $region12: #{tpu_custom_call.1} parent=1 // pred_region
      _
    $region13: #{tpu_custom_call.1} parent=1 // pred_fallthru
      _
    // Predicated region
    $region14: #{tpu_custom_call.1} parent=1 // pred_check
      _
    $region15: #{tpu_custom_call.1} parent=1 // pred_check_branch
      %38 = sbr.rel (0) target = $region17
    $region16: #{tpu_custom_call.1} parent=1 // pred_region
      %40 = dma.done [#allocation3], 256
    $region17: #{tpu_custom_call.1} parent=1 // pred_fallthru
      _
    // Predicated region
    $region18: #{tpu_custom_call.1} parent=1 // pred_check
      _
    $region19: #{tpu_custom_call.1} parent=1 // pred_check_branch
      %42 = sbr.rel (0) target = $region21
    $region20: #{tpu_custom_call.1} parent=1 // pred_region
      %44 = dma.done [#allocation6], 16
    $region21: #{tpu_custom_call.1} parent=1 // pred_fallthru
      _
    %v45 = vld [vmem:[#allocation2] sm:$0xff]
    %v46 = vld [vmem:[#allocation2 + $0x8] sm:$0xff]
    %v47 = vlaneseq
    %v48 = vand.u32 %v47, 127
    %vm49 = vcmp.lt.s32.totalorder %v48, 32
    %v50 = vsel %vm49, %v45, 0.0
    %v51 = vsel %vm49, %v46, 0.0
    %v52 = vld [vmem:[#allocation5] sm:$0x1]
    %v53 = vld [vmem:[%s2] sm:$0x1]
    %54 = vadd.xlane.f32.xlu0 %v50
    %v55 = vpop.xlane.xlu0 %54
    %56 = vadd.xlane.f32.xlu0 %v51
    %v57 = vpop.xlane.xlu0 %56
    %v58 = vmul.f32 %v50, %v50
    %v59 = vmul.f32 %v51, %v51
    %60 = vadd.xlane.f32.xlu0 %v58
    %v61 = vpop.xlane.xlu0 %60
    %62 = vadd.xlane.f32.xlu0 %v59
    %v63 = vpop.xlane.xlu0 %62
    %v64 = vmul.f32 %v55, 0.03125
    %v65 = vmul.f32 %v57, 0.03125
    %v66 = vmul.f32 %v61, 0.03125
    %v67 = vmul.f32 %v63, 0.03125
    %v68 = vmul.f32 %v64, %v64
    %v69 = vmul.f32 %v65, %v65
    %v70 = vsub.f32 %v66, %v68
    %v71 = vsub.f32 %v67, %v69
    %v72 = vmax.f32 %v70, 0.0
    %v73 = vmax.f32 %v71, 0.0
    %v74 = vadd.f32 %v72, 1e-05
    %v75 = vadd.f32 %v73, 1e-05
    %v76 = vrsqrt.pop %v74
    %v77 = vmul.f32 %v76, %v74
    %v78 = vmul.f32 %v77, %v76
    %v79 = vmul.f32 0.5, %v78
    %v80 = vsub.f32 1.5, %v79
    %v81 = vmul.f32 %v76, %v80
    %vm82 = vweird.f32 %v74
    %vm83 = vweird.f32 %v76
    %vm84 = vmor %vm82, %vm83
    %v85 = vsel %vm84, %v76, %v81
    %v86 = vrsqrt.pop %v75
    %v87 = vmul.f32 %v86, %v75
    %v88 = vmul.f32 %v87, %v86
    %v89 = vmul.f32 0.5, %v88
    %v90 = vsub.f32 1.5, %v89
    %v91 = vmul.f32 %v86, %v90
    %vm92 = vweird.f32 %v75
    %vm93 = vweird.f32 %v86
    %vm94 = vmor %vm92, %vm93
    %v95 = vsel %vm94, %v86, %v91
    %v96 = vmul.f32 %v64, %v85
    %v97 = vmul.f32 %v65, %v95
    %v98 = vmul.f32 %v50, %v85
    %v99 = vmul.f32 %v51, %v95
    %v100 = vsub.f32 %v98, %v96
    %v101 = vsub.f32 %v99, %v97
    %v103 = vperm.slane %v52, 0
    %v105 = vmul.f32 %v100, %v103
    %v106 = vmul.f32 %v101, %v103
    %v108 = vperm.slane %v53, 0
    %v110 = vadd.f32 %v105, %v108
    %v111 = vadd.f32 %v106, %v108
    %112 = vst [vmem:[#allocation7] sm:$0xff] %v110
    %113 = vst [vmem:[#allocation7 + $0x8] sm:$0xff] %v111
    // Predicated region
    $region22: #{tpu_custom_call.1} parent=1 // pred_check
      _
    $region23: #{tpu_custom_call.1} parent=1 // pred_check_branch
      %115 = sbr.rel (0) target = $region25
    $region24: #{tpu_custom_call.1} parent=1 // pred_region
      %117 = vsyncadd [#allocation4], 0
      %s118 = sshll.u32 [#allocation7], 4
      %s119 = int_to_ptr.vmem [resolvable:$true] %s118
      %s120 = sshll.u32 %s3, 4
      %s121 = int_to_ptr.hbm [resolvable:$true] %s120
      %126 = dma.vmem_to_hbm [thread:$0]  %s119, 256, %s121, [#allocation4], 128, 128, 8
    $region25: #{tpu_custom_call.1} parent=1 // pred_fallthru
      _
    // Predicated region
    $region26: #{tpu_custom_call.1} parent=1 // pred_check
      _
    $region27: #{tpu_custom_call.1} parent=1 // pred_check_branch
      %128 = sbr.rel (0) target = $region29
    $region28: #{tpu_custom_call.1} parent=1 // pred_region
      %130 = dma.done [#allocation4], 256
    $region29: #{tpu_custom_call.1} parent=1 // pred_fallthru
      _
    %131 = vsyncpa [#allocation3], 1
    %132 = vsyncpa [#allocation6], 1
    %133 = vsyncpa [#allocation4], 1

</llo_original>
